<compile_context>
chip_gen: v7x
topology: tpu7x:2x2x1
jax: 0.10.0
libtpu: 0.0.40
codegen_flags: <defaults>
</compile_context>

<pallas_src>
import jax
import jax.numpy as jnp
from jax.experimental import pallas as pl
from jax.experimental.pallas import tpu as pltpu


def _round_up(v, m):
    return ((v + m - 1) // m) * m


def _device_kind():
    try:
        return jax.devices()[0].device_kind.lower()
    except Exception:
        return ""


def _is_v7x():
    k = _device_kind()
    return ("v7" in k) or ("7x" in k)


def _vmem_limit_bytes():
    k = _device_kind()
    if ("v7" in k) or ("7x" in k):
        return 48 * 1024 * 1024      # 64 MiB physical per TC -> leave headroom
    if "v6" in k:
        return 96 * 1024 * 1024      # 128 MiB physical, 32 MiB scoped default
    if "v5" in k:
        return 80 * 1024 * 1024      # 128 MiB physical, 16 MiB scoped default
    return 48 * 1024 * 1024          # unknown generation: conservative


# ---------------------------------------------------------------------------
# Kernels: one (tm, tn) output tile; K is the innermost ('arbitrary') grid
# axis.  The output block index map ignores k, so o_ref stays resident in VMEM
# across the whole K reduction and is used directly as the f32 accumulator.
# ---------------------------------------------------------------------------
def _linear_bias_kernel(x_ref, w_ref, b_ref, o_ref):
    k = pl.program_id(2)

    @pl.when(k == 0)
    def _():
        o_ref[...] = jnp.zeros_like(o_ref)

    o_ref[...] += jnp.dot(x_ref[...], w_ref[...],
                          preferred_element_type=jnp.float32)

    @pl.when(k == pl.num_programs(2) - 1)
    def _():
        o_ref[...] = o_ref[...] + b_ref[...]


def _linear_nobias_kernel(x_ref, w_ref, o_ref):
    k = pl.program_id(2)

    @pl.when(k == 0)
    def _():
        o_ref[...] = jnp.zeros_like(o_ref)

    o_ref[...] += jnp.dot(x_ref[...], w_ref[...],
                          preferred_element_type=jnp.float32)


# ---------------------------------------------------------------------------
# One-time parameter preparation (outside the hot path).
# ---------------------------------------------------------------------------
def prepare_linear_params(weight, bias=None, *, tn=512, tk=1024,
                          operand_dtype=jnp.bfloat16):
    """Prepare nn.Linear params once: transpose to (K, N), pad, cast to bf16.

    weight: (num_out, num_inp) in native PyTorch layout.
    bias:   (num_out,) or None.
    """
    N, K = weight.shape
    Np = _round_up(N, 128)
    Kp = _round_up(K, 128)
    tn = min(tn, Np)
    tk = min(tk, Kp)

    # v7x has 2 TensorCores sharded over 'parallel' axes: make sure the
    # parallel grid has >= 2 tiles along N when N allows it.
    if _is_v7x() and Np // tn < 2 and Np >= 256:
        tn = _round_up(Np // 2, 128)

    Np = _round_up(Np, tn)
    Kp = _round_up(Kp, tk)

    # Canonical (K, N) orientation -> no per-K-step weight transposes.
    w_kn = jnp.asarray(weight).T
    if (Kp, Np) != (K, N):
        w_kn = jnp.pad(w_kn, ((0, Kp - K), (0, Np - N)))
    w_kn = w_kn.astype(operand_dtype)

    b2 = None
    if bias is not None:
        b2 = jnp.asarray(bias).astype(jnp.float32)
        if Np != N:
            b2 = jnp.pad(b2, (0, Np - N))
        b2 = b2.reshape(1, Np)

    return dict(w=w_kn, b=b2, num_out=N, num_inp=K, Np=Np, Kp=Kp,
                tn=tn, tk=tk, operand_dtype=operand_dtype)


# ---------------------------------------------------------------------------
# Per-call forward.
# ---------------------------------------------------------------------------
def linear_forward(x, params, *, tm=None):
    """y = x @ weight.T (+ bias) with pre-prepared params. Output is f32."""
    B, K = x.shape
    assert K == params["num_inp"], "x feature dim must match weight"
    N = params["num_out"]
    Np, Kp = params["Np"], params["Kp"]
    tn, tk = params["tn"], params["tk"]
    op_dtype = params["operand_dtype"]
    w_kn, b2 = params["w"], params["b"]

    ib = jnp.dtype(op_dtype).itemsize
    ob = jnp.dtype(jnp.float32).itemsize

    Bp = _round_up(B, 8)

    vmem_limit = _vmem_limit_bytes()
    budget = int(vmem_limit * 0.75)   # headroom for Mosaic-internal scratch

    def footprint(tm_):
        x_b = 2 * tm_ * tk * ib       # x tile, double-buffered
        w_b = 2 * tk * tn * ib        # weight tile, double-buffered
        o_b = 2 * tm_ * tn * ob       # output/accumulator tile
        b_b = 2 * tn * 4 if b2 is not None else 0
        return x_b + w_b + o_b + b_b

    if tm is None:
        # Whole batch as one tile if it fits -> weight streams from HBM once.
        tm = min(Bp, 2048)
        while tm > 8 and footprint(tm) > budget:
            tm = _round_up(tm // 2, 8)
    tm = max(8, min(tm, Bp))
    Bp = _round_up(Bp, tm)

    x_p = x.astype(op_dtype)
    if (Bp, Kp) != (B, K):
        x_p = jnp.pad(x_p, ((0, Bp - B), (0, Kp - K)))

    grid = (Bp // tm, Np // tn, Kp // tk)

    # TODO(synk): if xprof still shows exposed DMA on long weight streams, add
    # pipeline_mode=pl.Buffered(3) on the weight BlockSpec (costs one extra
    # weight tile of VMEM; re-check the v7x 64 MiB budget first).
    in_specs = [
        pl.BlockSpec((tm, tk), lambda i, j, k: (i, k)),   # x tile
        pl.BlockSpec((tk, tn), lambda i, j, k: (k, j)),   # weight tile (K, N)
    ]
    operands = [x_p, w_kn]

    if b2 is not None:
        in_specs.append(pl.BlockSpec((1, tn), lambda i, j, k: (0, j)))
        operands.append(b2)
        kernel = _linear_bias_kernel
        bias_bytes = 4 * Np
    else:
        kernel = _linear_nobias_kernel
        bias_bytes = 0

    cost = pl.CostEstimate(
        flops=2 * B * K * N,
        transcendentals=0,
        bytes_accessed=ib * (Bp * Kp + Kp * Np) + ob * Bp * Np + bias_bytes,
    )

    out_p = pl.pallas_call(
        kernel,
        out_shape=jax.ShapeDtypeStruct((Bp, Np), jnp.float32),
        grid_spec=pltpu.PrefetchScalarGridSpec(
            num_scalar_prefetch=0,
            grid=grid,
            in_specs=in_specs,
            out_specs=pl.BlockSpec((tm, tn), lambda i, j, k: (i, j)),
        ),
        compiler_params=pltpu.CompilerParams(
            dimension_semantics=("parallel", "parallel", "arbitrary"),
            vmem_limit_bytes=vmem_limit,
        ),
        cost_estimate=cost,
    )(*operands)

    if (Bp, Np) != (B, N):
        out_p = out_p[:B, :N]
    return out_p


def linear_classification_net(x, weight, bias=None, **kwargs):
    """Convenience one-shot wrapper (prepare + forward). In steady state call
    prepare_linear_params once and reuse across forward calls."""
    params = prepare_linear_params(weight, bias)
    return linear_forward(x, params, **kwargs)


if __name__ == "__main__":
    # Small shapes consistent with the module: batch=8, num_inp=32, num_out=16.
    batch, num_inp, num_out = 8, 32, 16

    key = jax.random.PRNGKey(0)
    kx, kw, kb = jax.random.split(key, 3)

    x = jax.random.normal(kx, (batch, num_inp), dtype=jnp.float32)
    bound = 1.0 / (num_inp ** 0.5)
    weight = jax.random.uniform(
        kw, (num_out, num_inp), dtype=jnp.float32, minval=-bound, maxval=bound)
    bias = jax.random.uniform(
        kb, (num_out,), dtype=jnp.float32, minval=-bound, maxval=bound)

    # bias=True path: prepare once, then run the forward.
    params = prepare_linear_params(weight, bias)
    y = linear_forward(x, params)
    jax.block_until_ready(y)
    y_ref = x @ weight.T + bias
    assert y.shape == (batch, num_out)
    assert y.dtype == jnp.float32
    # bf16 operands with f32 accumulation -> loose tolerance vs pure-f32 ref.
    assert jnp.allclose(y, y_ref, atol=5e-2, rtol=5e-2), float(
        jnp.max(jnp.abs(y - y_ref)))

    # bias=False path (separate bias-free kernel build).
    params_nb = prepare_linear_params(weight, None)
    y_nb = linear_forward(x, params_nb)
    jax.block_until_ready(y_nb)
    assert jnp.allclose(y_nb, x @ weight.T, atol=5e-2, rtol=5e-2)

    print("KERNEL_OK")
</pallas_src>

<mosaic_0001>
module attributes {stable_mosaic.version = 11 : i64} {
  func.func @_linear_bias_kernel(%arg0: i32, %arg1: i32, %arg2: i32, %arg3: memref<8x128xbf16, #tpu.memory_space<vmem>>, %arg4: memref<128x128xbf16, #tpu.memory_space<vmem>>, %arg5: memref<1x128xf32, #tpu.memory_space<vmem>>, %arg6: memref<8x128xf32, #tpu.memory_space<vmem>>) attributes {dimension_semantics = [#tpu.dimension_semantics<parallel>, #tpu.dimension_semantics<parallel>, #tpu.dimension_semantics<arbitrary>], iteration_bounds = array<i64: 1, 1, 1>, scalar_prefetch = 0 : i64, scratch_operands = 0 : i64, tpu.core_type = #tpu.core_type<tc>, window_params = [{transform_indices = @transform_0, window_bounds = array<i64: 8, 128>}, {transform_indices = @transform_1, window_bounds = array<i64: 128, 128>}, {transform_indices = @transform_2, window_bounds = array<i64: 1, 128>}, {transform_indices = @transform_3, window_bounds = array<i64: 8, 128>}]} {
    %c0_i32 = arith.constant 0 : i32
    %0 = arith.cmpi eq, %arg2, %c0_i32 : i32
    %1 = arith.extui %0 : i1 to i32
    %c0_i32_0 = arith.constant 0 : i32
    %2 = arith.cmpi ne, %1, %c0_i32_0 : i32
    scf.if %2 {
      %cst_10 = arith.constant 0.000000e+00 : f32
      %12 = vector.broadcast %cst_10 : f32 to vector<8x128xf32>
      %c0_11 = arith.constant 0 : index
      %c0_12 = arith.constant 0 : index
      %13 = vector.load %arg6[%c0_11, %c0_12] : memref<8x128xf32, #tpu.memory_space<vmem>>, vector<8x128xf32>
      tpu.vector_store %arg6[%c0_11, %c0_12], %12 {strides = array<i32>} : memref<8x128xf32, #tpu.memory_space<vmem>>, vector<8x128xf32>,
    } else {
    }
    %c0 = arith.constant 0 : index
    %c0_1 = arith.constant 0 : index
    %3 = vector.load %arg6[%c0, %c0_1] : memref<8x128xf32, #tpu.memory_space<vmem>>, vector<8x128xf32>
    %c0_2 = arith.constant 0 : index
    %c0_3 = arith.constant 0 : index
    %4 = vector.load %arg3[%c0_2, %c0_3] : memref<8x128xbf16, #tpu.memory_space<vmem>>, vector<8x128xbf16>
    %c0_4 = arith.constant 0 : index
    %c0_5 = arith.constant 0 : index
    %5 = vector.load %arg4[%c0_4, %c0_5] : memref<128x128xbf16, #tpu.memory_space<vmem>>, vector<128x128xbf16>
    %cst = arith.constant dense<0.000000e+00> : vector<8x128xf32>
    %6 = tpu.matmul %4, %5, %cst {dimension_numbers = #tpu.dot_dimension_numbers<[1], [0], [0], [1], [0, 0, 1, 1], [], []>} : vector<8x128xbf16>, vector<128x128xbf16>, vector<8x128xf32> -> vector<8x128xf32>
    %7 = arith.addf %3, %6 : vector<8x128xf32>
    %c0_6 = arith.constant 0 : index
    %c0_7 = arith.constant 0 : index
    %8 = vector.load %arg6[%c0_6, %c0_7] : memref<8x128xf32, #tpu.memory_space<vmem>>, vector<8x128xf32>
    tpu.vector_store %arg6[%c0_6, %c0_7], %7 {strides = array<i32>} : memref<8x128xf32, #tpu.memory_space<vmem>>, vector<8x128xf32>,
    %c0_i32_8 = arith.constant 0 : i32
    %9 = arith.cmpi eq, %arg2, %c0_i32_8 : i32
    %10 = arith.extui %9 : i1 to i32
    %c0_i32_9 = arith.constant 0 : i32
    %11 = arith.cmpi ne, %10, %c0_i32_9 : i32
    scf.if %11 {
      %c0_10 = arith.constant 0 : index
      %c0_11 = arith.constant 0 : index
      %12 = vector.load %arg6[%c0_10, %c0_11] : memref<8x128xf32, #tpu.memory_space<vmem>>, vector<8x128xf32>
      %c0_12 = arith.constant 0 : index
      %c0_13 = arith.constant 0 : index
      %13 = vector.load %arg5[%c0_12, %c0_13] : memref<1x128xf32, #tpu.memory_space<vmem>>, vector<1x128xf32>
      %14 = vector.broadcast %13 : vector<1x128xf32> to vector<8x128xf32>
      %15 = arith.addf %12, %14 : vector<8x128xf32>
      %c0_14 = arith.constant 0 : index
      %c0_15 = arith.constant 0 : index
      %16 = vector.load %arg6[%c0_14, %c0_15] : memref<8x128xf32, #tpu.memory_space<vmem>>, vector<8x128xf32>
      tpu.vector_store %arg6[%c0_14, %c0_15], %15 {strides = array<i32>} : memref<8x128xf32, #tpu.memory_space<vmem>>, vector<8x128xf32>,
    } else {
    }
    return
  }
  func.func @transform_0(%arg0: i32, %arg1: i32, %arg2: i32) -> (i32, i32) {
    %c0_i32 = arith.constant 0 : i32
    return %arg0, %arg2 : i32, i32
  }
  func.func @transform_1(%arg0: i32, %arg1: i32, %arg2: i32) -> (i32, i32) {
    %c0_i32 = arith.constant 0 : i32
    return %arg2, %arg1 : i32, i32
  }
  func.func @transform_2(%arg0: i32, %arg1: i32, %arg2: i32) -> (i32, i32) {
    %c0_i32 = arith.constant 0 : i32
    %c0_i32_0 = arith.constant 0 : i32
    return %c0_i32, %arg1 : i32, i32
  }
  func.func @transform_3(%arg0: i32, %arg1: i32, %arg2: i32) -> (i32, i32) {
    %c0_i32 = arith.constant 0 : i32
    return %arg0, %arg1 : i32, i32
  }
}

</mosaic_0001>

<llo_original>
// kernel: tpu_custom_call.1
$region0: #{tpu_custom_call.1}
  #allocation0 [shape = 'u32[]', space=smem, size = 0x4, offset = 0x4, fixed_abs, tag = 'smem constant byte address 0x4 - core index']
  #allocation1 [shape = 'u32[144,128]{1,0:T(1,128)}', space=vmem, size = 0x12000, scoped, tag = 'internal scratch']
  %s0 = inlined_call_operand.hbm [shape: bf16[8,128], index: 0, kind: input, shape index: {}]
  %s1 = inlined_call_operand.hbm [shape: bf16[128,128], index: 1, kind: input, shape index: {}]
  %s2 = inlined_call_operand.vmem [shape: f32[1,128], index: 2, kind: input, shape index: {}]
  %s3 = inlined_call_operand.hbm [shape: f32[8,128], index: 3, kind: output, shape index: {}]
  %s4 = sld [smem:[#allocation0]]
  $region38: #{tpu_custom_call.1} parent=0
    _
  %s6 = ssub.s32 1, %s4
  %s7 = scalar_select 0, %s6, %s4
  $region1: #{tpu_custom_call.1} parent=0
    #allocation2 [shape = 'u8[2048]{0}', space=vmem, size = 0x800, scoped, tag = 'input window, operand 0, single buffered']
    #allocation3 [shape = 's32[1]{0}', space=sflag, size = 0x4, scoped, tag = 'scoped memory for tpu_custom_call.1']
    #allocation4 [shape = 's32[1]{0}', space=sflag, size = 0x4, scoped, tag = 'scoped memory for tpu_custom_call.1']
    #allocation5 [shape = 'u8[32768]{0}', space=vmem, size = 0x8000, scoped, tag = 'input window, operand 1, single buffered']
    #allocation6 [shape = 's32[1]{0}', space=sflag, size = 0x4, scoped, tag = 'scoped memory for tpu_custom_call.1']
    #allocation7 [shape = 'u8[4096]{0}', space=vmem, size = 0x1000, scoped, tag = 'output window, operand 0, single buffered']
    %8 = vsyncpa [#allocation3], 0
    %9 = vsyncpa [#allocation6], 0
    %10 = vsyncpa [#allocation4], 0
    // Predicated region
    $region2: #{tpu_custom_call.1} parent=1 // pred_check
      _
    $region3: #{tpu_custom_call.1} parent=1 // pred_check_branch
      %12 = sbr.rel (0) target = $region5
    $region4: #{tpu_custom_call.1} parent=1 // pred_region
      %s14 = ssub.s32 64, 64
      %15 = vsyncadd [#allocation3], %s14
      %s17 = sshll.u32 [#allocation2], 4
      %s18 = int_to_ptr.vmem [resolvable:$true] %s17
      %20 = dma.hbm_to_vmem [thread:$0]  %s0, 64, %s18, [#allocation3]
    $region5: #{tpu_custom_call.1} parent=1 // pred_fallthru
      _
    // Predicated region
    $region6: #{tpu_custom_call.1} parent=1 // pred_check
      _
    $region7: #{tpu_custom_call.1} parent=1 // pred_check_branch
      %22 = sbr.rel (0) target = $region9
    $region8: #{tpu_custom_call.1} parent=1 // pred_region
      %s24 = ssub.s32 1024, 1024
      %25 = vsyncadd [#allocation6], %s24
      %s26 = sshll.u32 [#allocation5], 4
      %s27 = int_to_ptr.vmem [resolvable:$true] %s26
      %32 = dma.hbm_to_vmem [thread:$0]  %s1, 1024, %s27, [#allocation6], 64, 64, 4
    $region9: #{tpu_custom_call.1} parent=1 // pred_fallthru
      _
    // Predicated region
    $region10: #{tpu_custom_call.1} parent=1 // pred_check
      _
    $region11: #{tpu_custom_call.1} parent=1 // pred_check_branch
      %34 = sbr.rel (0) target = $region13
    $region12: #{tpu_custom_call.1} parent=1 // pred_region
      _
    $region13: #{tpu_custom_call.1} parent=1 // pred_fallthru
      _
    // Predicated region
    $region14: #{tpu_custom_call.1} parent=1 // pred_check
      _
    $region15: #{tpu_custom_call.1} parent=1 // pred_check_branch
      %36 = sbr.rel (0) target = $region17
    $region16: #{tpu_custom_call.1} parent=1 // pred_region
      %37 = dma.done [#allocation3], 64
    $region17: #{tpu_custom_call.1} parent=1 // pred_fallthru
      _
    // Predicated region
    $region18: #{tpu_custom_call.1} parent=1 // pred_check
      _
    $region19: #{tpu_custom_call.1} parent=1 // pred_check_branch
      %39 = sbr.rel (0) target = $region21
    $region20: #{tpu_custom_call.1} parent=1 // pred_region
      %40 = dma.done [#allocation6], 1024
    $region21: #{tpu_custom_call.1} parent=1 // pred_fallthru
      _
    %p42 = scmp.eq.s32.totalorder 0, 0
    // Predicated region
    $region22: #{tpu_custom_call.1} parent=1 // pred_check
      %p43 = pneg %p42
    $region23: #{tpu_custom_call.1} parent=1 // pred_check_branch
      %45 = sbr.rel (%p43) target = $region25
    $region24: #{tpu_custom_call.1} parent=1 // pred_region
      %46 = vst [vmem:[#allocation7] sm:$0xff] 0.0
    $region25: #{tpu_custom_call.1} parent=1 // pred_fallthru
      _
    %v47 = vld [vmem:[#allocation7] sm:$0xff]
    %v48 = vld [vmem:[#allocation2] sm:$0xf]
    %v49 = vld [vmem:[#allocation5] sm:$0xf]
    %v50 = vld [vmem:[#allocation5 + $0x4] sm:$0xf]
    %v51 = vld [vmem:[#allocation5 + $0x8] sm:$0xf]
    %v52 = vld [vmem:[#allocation5 + $0xc] sm:$0xf]
    %v53 = vld [vmem:[#allocation5 + $0x10] sm:$0xf]
    %v54 = vld [vmem:[#allocation5 + $0x14] sm:$0xf]
    %v55 = vld [vmem:[#allocation5 + $0x18] sm:$0xf]
    %v56 = vld [vmem:[#allocation5 + $0x1c] sm:$0xf]
    %v57 = vld [vmem:[#allocation5 + $0x20] sm:$0xf]
    %v58 = vld [vmem:[#allocation5 + $0x24] sm:$0xf]
    %v59 = vld [vmem:[#allocation5 + $0x28] sm:$0xf]
    %v60 = vld [vmem:[#allocation5 + $0x2c] sm:$0xf]
    %v61 = vld [vmem:[#allocation5 + $0x30] sm:$0xf]
    %v62 = vld [vmem:[#allocation5 + $0x34] sm:$0xf]
    %v63 = vld [vmem:[#allocation5 + $0x38] sm:$0xf]
    %v64 = vld [vmem:[#allocation5 + $0x3c] sm:$0xf]
    %v81 = vunpack.c.l.b16 %v49
    %v82 = vunpack.c.l.b16 %v50
    %v83 = vunpack.c.l.b16 %v51
    %v84 = vunpack.c.l.b16 %v52
    %v85 = vunpack.c.l.b16 %v53
    %v86 = vunpack.c.l.b16 %v54
    %v87 = vunpack.c.l.b16 %v55
    %v88 = vunpack.c.l.b16 %v56
    %v89 = vunpack.c.l.b16 %v57
    %v90 = vunpack.c.l.b16 %v58
    %v91 = vunpack.c.l.b16 %v59
    %v92 = vunpack.c.l.b16 %v60
    %v93 = vunpack.c.l.b16 %v61
    %v94 = vunpack.c.l.b16 %v62
    %v95 = vunpack.c.l.b16 %v63
    %v96 = vunpack.c.l.b16 %v64
    %v97 = vpack.c.b16 %v82, %v81
    %v98 = vpack.c.b16 %v84, %v83
    %v99 = vpack.c.b16 %v86, %v85
    %v100 = vpack.c.b16 %v88, %v87
    %v101 = vpack.c.b16 %v90, %v89
    %v102 = vpack.c.b16 %v92, %v91
    %v103 = vpack.c.b16 %v94, %v93
    %v104 = vpack.c.b16 %v96, %v95
    %113 = vmatprep.subr.bf16.mxu0 0
    %114 = vmatpush1.bf16.msra.mxu0 %v97
    %115 = vmatprep.subr.bf16.mxu0 0
    %116 = vmatpush1.bf16.msra.mxu0 %v98
    %117 = vmatprep.subr.bf16.mxu0 0
    %118 = vmatpush1.bf16.msra.mxu0 %v99
    %119 = vmatprep.subr.bf16.mxu0 0
    %120 = vmatpush1.bf16.msra.mxu0 %v100
    %121 = vmatprep.subr.bf16.mxu0 0
    %122 = vmatpush1.bf16.msra.mxu0 %v101
    %123 = vmatprep.subr.bf16.mxu0 0
    %124 = vmatpush1.bf16.msra.mxu0 %v102
    %125 = vmatprep.subr.bf16.mxu0 0
    %126 = vmatpush1.bf16.msra.mxu0 %v103
    %127 = vmatprep.subr.bf16.mxu0 0
    %128 = vmatpush1.bf16.msra.mxu0 %v104
    %129 = vmatprep.subr.bf16.mxu0 0
    %130 = vmatpush1.bf16.msra.mxu0 0
    %131 = vmatprep.subr.bf16.mxu0 0
    %132 = vmatpush1.bf16.msra.mxu0 0
    %133 = vmatprep.subr.bf16.mxu0 0
    %134 = vmatpush1.bf16.msra.mxu0 0
    %135 = vmatprep.subr.bf16.mxu0 0
    %136 = vmatpush1.bf16.msra.mxu0 0
    %137 = vmatprep.subr.bf16.mxu0 0
    %138 = vmatpush1.bf16.msra.mxu0 0
    %139 = vmatprep.subr.bf16.mxu0 0
    %140 = vmatpush1.bf16.msra.mxu0 0
    %141 = vmatprep.subr.bf16.mxu0 0
    %142 = vmatpush1.bf16.msra.mxu0 0
    %143 = vmatprep.subr.bf16.mxu0 0
    %144 = vmatpush1.bf16.msra.mxu0 0
    %145 = vmatprep.mubr.bf16.mxu0 0
    %146 = vmatmul.mubr.bf16.gmra.mrb[0].mxu0 %v48
    %v147 = vpop.f32.mrb[0].mxu0
    %v148 = vadd.f32 0.0, %v147
    %v149 = vpop.f32.mrb[0].mxu0
    %v150 = vpop.f32.mrb[0].mxu0
    %v151 = vpop.f32.mrb[0].mxu0
    %152 = vdwg.mxu0
    %v153 = vadd.f32 %v47, %v148
    %154 = vst [vmem:[#allocation7] sm:$0xff] %v153
    // Predicated region
    $region26: #{tpu_custom_call.1} parent=1 // pred_check
      %p155 = pneg %p42
    $region27: #{tpu_custom_call.1} parent=1 // pred_check_branch
      %157 = sbr.rel (%p155) target = $region29
    $region28: #{tpu_custom_call.1} parent=1 // pred_region
      %v158 = vld [vmem:[#allocation7] sm:$0xff]
      %v159 = vld [vmem:[%s2] sm:$0x1]
      %v161 = vlaneseq
      %v162 = vshrl.u32 %v161, 7
      %v163 = vsub.s32 0, %v162
      %v164 = vrot.slane %v159, %v163
      %v166 = vadd.f32 %v158, %v164
      %167 = vst [vmem:[#allocation7] sm:$0xff] %v166
    $region29: #{tpu_custom_call.1} parent=1 // pred_fallthru
      _
    // Predicated region
    $region30: #{tpu_custom_call.1} parent=1 // pred_check
      _
    $region31: #{tpu_custom_call.1} parent=1 // pred_check_branch
      %169 = sbr.rel (0) target = $region33
    $region32: #{tpu_custom_call.1} parent=1 // pred_region
      %s171 = ssub.s32 128, 128
      %172 = vsyncadd [#allocation4], %s171
      %s174 = sshll.u32 [#allocation7], 4
      %s175 = int_to_ptr.vmem [resolvable:$true] %s174
      %177 = dma.vmem_to_hbm [thread:$0]  %s175, 128, %s3, [#allocation4]
    $region33: #{tpu_custom_call.1} parent=1 // pred_fallthru
      _
    // Predicated region
    $region34: #{tpu_custom_call.1} parent=1 // pred_check
      _
    $region35: #{tpu_custom_call.1} parent=1 // pred_check_branch
      %179 = sbr.rel (0) target = $region37
    $region36: #{tpu_custom_call.1} parent=1 // pred_region
      %180 = dma.done [#allocation4], 128
    $region37: #{tpu_custom_call.1} parent=1 // pred_fallthru
      _
    %181 = vsyncpa [#allocation3], 1
    %182 = vsyncpa [#allocation6], 1
    %183 = vsyncpa [#allocation4], 1

</llo_original>
